<compile_context>
chip_gen: v7x
topology: tpu7x:2x2x1
jax: 0.10.0
libtpu: 0.0.40
codegen_flags: <defaults>
</compile_context>

<pallas_src>
import functools

import jax
import jax.numpy as jnp
from jax.experimental import pallas as pl
from jax.experimental.pallas import tpu as pltpu

N_LAYERS = 5
F_PAD = 128        # hidden feature dims padded to one full vreg lane width
OUT_PAD = 8        # output lanes materialized in HBM (>= out_dim = 2)
B_SUBLANE = 8      # f32 sublane granularity


def _round_up(n, m):
    return ((n + m - 1) // m) * m


def _num_tensorcores():
    """Best-effort TensorCore count for grid-step selection (2 on v7x, else 1)."""
    try:
        kind = (getattr(jax.devices()[0], "device_kind", "") or "").lower()
        if "v7" in kind or "7x" in kind:
            return 2
    except Exception:
        pass
    return 1


def _q_mlp_kernel(x_ref, w_ref, b_ref, out_ref, *, obs_len, out_pad):
    """Fused 5-layer MLP: h <- relu(h @ W_l + b_l), l = 0..4.

    x_ref  : (TILE_B, obs_len) f32 activations (no lane padding in HBM)
    w_ref  : (5, 128, 128) bf16 packed zero-padded weights (resident)
    b_ref  : (8, 128) f32 packed zero-padded biases, row l = bias of layer l
    out_ref: (TILE_B, out_pad) f32; Q-values live in lanes 0..out_dim-1
    """
    b_all = b_ref[...]                                      # (8, 128) f32, one vreg tile

    # Layer 0: contract directly over the tiny obs_len axis (MXU pads K
    # internally) -- avoids materializing a lane-padded input in HBM.
    x = x_ref[...].astype(jnp.bfloat16)                     # (tb, obs_len)
    w0 = w_ref[0, :obs_len, :]                              # (obs_len, 128) bf16
    y = jnp.dot(x, w0, preferred_element_type=jnp.float32) + b_all[0:1, :]
    h = jnp.maximum(y, 0.0)                                 # (tb, 128) f32

    # Layers 1..4: lane-dense 128x128 bf16 matmuls with f32 accumulation.
    for l in range(1, N_LAYERS):
        y = jnp.dot(h.astype(jnp.bfloat16), w_ref[l],
                    preferred_element_type=jnp.float32) + b_all[l:l + 1, :]
        h = jnp.maximum(y, 0.0)                             # ReLU after fc5 too (per Q.forward)

    # Padded lanes carry zero weights/biases -> stay exactly 0 through ReLU.
    out_ref[...] = h[:, :out_pad].astype(out_ref.dtype)


def pack_q_params(params):
    """Pack [(W_l (in,out), b_l (1,out))] -> bf16 weight slab + f32 bias tile."""
    assert len(params) == N_LAYERS
    w_slab = jnp.zeros((N_LAYERS, F_PAD, F_PAD), jnp.bfloat16)
    b_slab = jnp.zeros((B_SUBLANE, F_PAD), jnp.float32)
    for l, (w, b) in enumerate(params):
        fi, fo = w.shape
        w_slab = w_slab.at[l, :fi, :fo].set(w.astype(jnp.bfloat16))
        b_slab = b_slab.at[l, :fo].set(jnp.reshape(b, (-1,)).astype(jnp.float32))
    obs_len = params[0][0].shape[0]
    out_dim = params[-1][0].shape[1]
    return w_slab, b_slab, obs_len, out_dim


def q_forward(x, w_slab, b_slab, obs_len, out_dim, *, tile_b_cap=2048, num_cores=None):
    """x: (B, obs_len) float32. Returns (B, out_dim) float32 Q-values."""
    B = x.shape[0]
    assert x.shape[1] == obs_len
    x = x.astype(jnp.float32)

    # Grid-step selection: 1 step on single-TC chips (v5e/v6e), 2 on v7x,
    # capped so per-tile intermediates stay tiny relative to scoped VMEM.
    cores = _num_tensorcores() if num_cores is None else num_cores
    rows = _round_up(B, B_SUBLANE)
    tb = min(tile_b_cap, _round_up(-(-rows // cores), B_SUBLANE))
    n_tiles = -(-rows // tb)
    padded_b = n_tiles * tb

    # Only batch padding (and only when needed); no 128-lane pad pass in HBM.
    if padded_b != B:
        x_in = jnp.zeros((padded_b, obs_len), jnp.float32).at[:B].set(x)
    else:
        x_in = x

    kernel = functools.partial(_q_mlp_kernel, obs_len=obs_len, out_pad=OUT_PAD)

    def call(single_buffer_resident):
        resident_kw = (dict(pipeline_mode=pl.Buffered(1))
                       if single_buffer_resident else {})
        return pl.pallas_call(
            kernel,
            out_shape=jax.ShapeDtypeStruct((padded_b, OUT_PAD), jnp.float32),
            grid=(n_tiles,),
            in_specs=[
                # activations: tiled over batch, last dim == full array dim
                pl.BlockSpec((tb, obs_len), lambda i: (i, 0)),
                # packed weights / biases: resident across batch tiles
                pl.BlockSpec((N_LAYERS, F_PAD, F_PAD), lambda i: (0, 0, 0),
                             **resident_kw),
                pl.BlockSpec((B_SUBLANE, F_PAD), lambda i: (0, 0),
                             **resident_kw),
            ],
            out_specs=pl.BlockSpec((tb, OUT_PAD), lambda i: (i, 0)),
            compiler_params=pltpu.CompilerParams(
                dimension_semantics=("parallel",)),      # shards steps across TCs on v7x
        )(x_in, w_slab, b_slab)

    try:
        out = call(True)    # single-buffer the resident weight/bias operands
    except Exception:
        out = call(False)   # fallback if Buffered(1) is unsupported here

    # TODO(synk): fuse the argmax / epsilon-greedy consumer into the kernel so
    # it emits actions directly and this slice + extra launch boundary go away.
    return out[:B, :out_dim]


def init_q_params(key, obs_len=4):
    """Deterministic parameter init mirroring the nn.Linear shapes of Q."""
    dims = [obs_len, obs_len * 2, obs_len * 3, obs_len * 2, obs_len, 2]
    params = []
    for i in range(len(dims) - 1):
        fan_in, fan_out = dims[i], dims[i + 1]
        key, kw, kb = jax.random.split(key, 3)
        bound = 1.0 / jnp.sqrt(fan_in)
        # stored as (in, out) == PyTorch weight.T
        w = jax.random.uniform(kw, (fan_in, fan_out), jnp.float32, -bound, bound)
        b = jax.random.uniform(kb, (1, fan_out), jnp.float32, -bound, bound)
        params.append((w, b))
    return params


def q_forward_ref(x, params, *, use_bf16=False):
    """Plain-JAX reference. use_bf16=True emulates the kernel's MXU precision."""
    h = x.astype(jnp.float32)
    for w, b in params:
        if use_bf16:
            y = jnp.dot(h.astype(jnp.bfloat16), w.astype(jnp.bfloat16),
                        preferred_element_type=jnp.float32) + b
        else:
            y = h @ w + b
        h = jnp.maximum(y, 0.0)
    return h


if __name__ == "__main__":
    obs_len = 4
    params = init_q_params(jax.random.PRNGKey(0), obs_len=obs_len)
    w_slab, b_slab, obs_len_p, out_dim = pack_q_params(params)

    # Small single-tile case (B=8, grid=(1,)).
    key = jax.random.PRNGKey(0)
    key, kx = jax.random.split(key)
    x_small = jax.random.normal(kx, (8, obs_len), jnp.float32)
    out_small = jax.block_until_ready(
        q_forward(x_small, w_slab, b_slab, obs_len_p, out_dim))
    assert out_small.shape == (8, out_dim)
    ref_small_bf16 = q_forward_ref(x_small, params, use_bf16=True)
    ref_small_f32 = q_forward_ref(x_small, params, use_bf16=False)
    assert jnp.allclose(out_small, ref_small_bf16, atol=5e-3, rtol=5e-3), "mismatch vs bf16 ref (B=8)"
    assert jnp.allclose(out_small, ref_small_f32, atol=5e-2, rtol=5e-2), "mismatch vs f32 ref (B=8)"

    # Larger batch with default config (1 grid step on v5e/v6e, 2 on v7x).
    key, kx2 = jax.random.split(key)
    x_big = jax.random.normal(kx2, (1000, obs_len), jnp.float32)
    out_big = jax.block_until_ready(
        q_forward(x_big, w_slab, b_slab, obs_len_p, out_dim))
    assert out_big.shape == (1000, out_dim)
    ref_big_bf16 = q_forward_ref(x_big, params, use_bf16=True)
    ref_big_f32 = q_forward_ref(x_big, params, use_bf16=False)
    assert jnp.allclose(out_big, ref_big_bf16, atol=5e-3, rtol=5e-3), "mismatch vs bf16 ref (B=1000)"
    assert jnp.allclose(out_big, ref_big_f32, atol=5e-2, rtol=5e-2), "mismatch vs f32 ref (B=1000)"

    # Forced multi-tile grid (grid=(4,)) to exercise resident weights + batch padding.
    out_multi = jax.block_until_ready(
        q_forward(x_big, w_slab, b_slab, obs_len_p, out_dim,
                  tile_b_cap=256, num_cores=1))
    assert out_multi.shape == (1000, out_dim)
    assert jnp.allclose(out_multi, ref_big_bf16, atol=5e-3, rtol=5e-3), "mismatch multi-tile (B=1000)"

    print("KERNEL_OK")
</pallas_src>

<mosaic_0001>
module attributes {stable_mosaic.version = 11 : i64} {
  func.func @_q_mlp_kernel(%arg0: i32, %arg1: memref<8x4xf32, #tpu.memory_space<vmem>>, %arg2: memref<5x128x128xbf16, #tpu.memory_space<vmem>>, %arg3: memref<8x128xf32, #tpu.memory_space<vmem>>, %arg4: memref<8x8xf32, #tpu.memory_space<vmem>>) attributes {dimension_semantics = [#tpu.dimension_semantics<parallel>], iteration_bounds = array<i64: 1>, scalar_prefetch = 0 : i64, scratch_operands = 0 : i64, tpu.core_type = #tpu.core_type<tc>, window_params = [{transform_indices = @transform_0, window_bounds = array<i64: 8, 4>}, {pipeline_mode = #tpu.pipeline_mode<synchronous>, transform_indices = @transform_1, window_bounds = array<i64: 5, 128, 128>}, {pipeline_mode = #tpu.pipeline_mode<synchronous>, transform_indices = @transform_2, window_bounds = array<i64: 8, 128>}, {transform_indices = @transform_3, window_bounds = array<i64: 8, 8>}]} {
    %c0 = arith.constant 0 : index
    %c0_0 = arith.constant 0 : index
    %0 = vector.load %arg3[%c0, %c0_0] : memref<8x128xf32, #tpu.memory_space<vmem>>, vector<8x128xf32>
    %c0_1 = arith.constant 0 : index
    %c0_2 = arith.constant 0 : index
    %1 = vector.load %arg1[%c0_1, %c0_2] : memref<8x4xf32, #tpu.memory_space<vmem>>, vector<8x4xf32>
    %2 = arith.truncf %1 : vector<8x4xf32> to vector<8x4xbf16>
    %c0_3 = arith.constant 0 : index
    %c0_4 = arith.constant 0 : index
    %c0_5 = arith.constant 0 : index
    %3 = vector.load %arg2[%c0_3, %c0_4, %c0_5] : memref<5x128x128xbf16, #tpu.memory_space<vmem>>, vector<1x4x128xbf16>
    %4 = vector.shape_cast %3 : vector<1x4x128xbf16> to vector<4x128xbf16>
    %cst = arith.constant dense<0.000000e+00> : vector<8x128xf32>
    %5 = tpu.matmul %2, %4, %cst {dimension_numbers = #tpu.dot_dimension_numbers<[1], [0], [0], [1], [0, 0, 1, 1], [], []>} : vector<8x4xbf16>, vector<4x128xbf16>, vector<8x128xf32> -> vector<8x128xf32>
    %6 = vector.extract_strided_slice %0 {offsets = [0, 0], sizes = [1, 128], strides = [1, 1]} : vector<8x128xf32> to vector<1x128xf32>
    %7 = vector.broadcast %6 : vector<1x128xf32> to vector<8x128xf32>
    %8 = arith.addf %5, %7 : vector<8x128xf32>
    %cst_6 = arith.constant 0.000000e+00 : f32
    %9 = vector.broadcast %cst_6 : f32 to vector<8x128xf32>
    %10 = arith.maximumf %8, %9 : vector<8x128xf32>
    %11 = arith.truncf %10 : vector<8x128xf32> to vector<8x128xbf16>
    %c1 = arith.constant 1 : index
    %c0_7 = arith.constant 0 : index
    %c0_8 = arith.constant 0 : index
    %12 = vector.load %arg2[%c1, %c0_7, %c0_8] : memref<5x128x128xbf16, #tpu.memory_space<vmem>>, vector<1x128x128xbf16>
    %13 = vector.shape_cast %12 : vector<1x128x128xbf16> to vector<128x128xbf16>
    %cst_9 = arith.constant dense<0.000000e+00> : vector<8x128xf32>
    %14 = tpu.matmul %11, %13, %cst_9 {dimension_numbers = #tpu.dot_dimension_numbers<[1], [0], [0], [1], [0, 0, 1, 1], [], []>} : vector<8x128xbf16>, vector<128x128xbf16>, vector<8x128xf32> -> vector<8x128xf32>
    %15 = vector.extract_strided_slice %0 {offsets = [1, 0], sizes = [1, 128], strides = [1, 1]} : vector<8x128xf32> to vector<1x128xf32>
    %16 = vector.broadcast %15 : vector<1x128xf32> to vector<8x128xf32>
    %17 = arith.addf %14, %16 : vector<8x128xf32>
    %cst_10 = arith.constant 0.000000e+00 : f32
    %18 = vector.broadcast %cst_10 : f32 to vector<8x128xf32>
    %19 = arith.maximumf %17, %18 : vector<8x128xf32>
    %20 = arith.truncf %19 : vector<8x128xf32> to vector<8x128xbf16>
    %c2 = arith.constant 2 : index
    %c0_11 = arith.constant 0 : index
    %c0_12 = arith.constant 0 : index
    %21 = vector.load %arg2[%c2, %c0_11, %c0_12] : memref<5x128x128xbf16, #tpu.memory_space<vmem>>, vector<1x128x128xbf16>
    %22 = vector.shape_cast %21 : vector<1x128x128xbf16> to vector<128x128xbf16>
    %cst_13 = arith.constant dense<0.000000e+00> : vector<8x128xf32>
    %23 = tpu.matmul %20, %22, %cst_13 {dimension_numbers = #tpu.dot_dimension_numbers<[1], [0], [0], [1], [0, 0, 1, 1], [], []>} : vector<8x128xbf16>, vector<128x128xbf16>, vector<8x128xf32> -> vector<8x128xf32>
    %24 = vector.extract_strided_slice %0 {offsets = [2, 0], sizes = [1, 128], strides = [1, 1]} : vector<8x128xf32> to vector<1x128xf32>
    %25 = vector.broadcast %24 : vector<1x128xf32> to vector<8x128xf32>
    %26 = arith.addf %23, %25 : vector<8x128xf32>
    %cst_14 = arith.constant 0.000000e+00 : f32
    %27 = vector.broadcast %cst_14 : f32 to vector<8x128xf32>
    %28 = arith.maximumf %26, %27 : vector<8x128xf32>
    %29 = arith.truncf %28 : vector<8x128xf32> to vector<8x128xbf16>
    %c3 = arith.constant 3 : index
    %c0_15 = arith.constant 0 : index
    %c0_16 = arith.constant 0 : index
    %30 = vector.load %arg2[%c3, %c0_15, %c0_16] : memref<5x128x128xbf16, #tpu.memory_space<vmem>>, vector<1x128x128xbf16>
    %31 = vector.shape_cast %30 : vector<1x128x128xbf16> to vector<128x128xbf16>
    %cst_17 = arith.constant dense<0.000000e+00> : vector<8x128xf32>
    %32 = tpu.matmul %29, %31, %cst_17 {dimension_numbers = #tpu.dot_dimension_numbers<[1], [0], [0], [1], [0, 0, 1, 1], [], []>} : vector<8x128xbf16>, vector<128x128xbf16>, vector<8x128xf32> -> vector<8x128xf32>
    %33 = vector.extract_strided_slice %0 {offsets = [3, 0], sizes = [1, 128], strides = [1, 1]} : vector<8x128xf32> to vector<1x128xf32>
    %34 = vector.broadcast %33 : vector<1x128xf32> to vector<8x128xf32>
    %35 = arith.addf %32, %34 : vector<8x128xf32>
    %cst_18 = arith.constant 0.000000e+00 : f32
    %36 = vector.broadcast %cst_18 : f32 to vector<8x128xf32>
    %37 = arith.maximumf %35, %36 : vector<8x128xf32>
    %38 = arith.truncf %37 : vector<8x128xf32> to vector<8x128xbf16>
    %c4 = arith.constant 4 : index
    %c0_19 = arith.constant 0 : index
    %c0_20 = arith.constant 0 : index
    %39 = vector.load %arg2[%c4, %c0_19, %c0_20] : memref<5x128x128xbf16, #tpu.memory_space<vmem>>, vector<1x128x128xbf16>
    %40 = vector.shape_cast %39 : vector<1x128x128xbf16> to vector<128x128xbf16>
    %cst_21 = arith.constant dense<0.000000e+00> : vector<8x128xf32>
    %41 = tpu.matmul %38, %40, %cst_21 {dimension_numbers = #tpu.dot_dimension_numbers<[1], [0], [0], [1], [0, 0, 1, 1], [], []>} : vector<8x128xbf16>, vector<128x128xbf16>, vector<8x128xf32> -> vector<8x128xf32>
    %42 = vector.extract_strided_slice %0 {offsets = [4, 0], sizes = [1, 128], strides = [1, 1]} : vector<8x128xf32> to vector<1x128xf32>
    %43 = vector.broadcast %42 : vector<1x128xf32> to vector<8x128xf32>
    %44 = arith.addf %41, %43 : vector<8x128xf32>
    %cst_22 = arith.constant 0.000000e+00 : f32
    %45 = vector.broadcast %cst_22 : f32 to vector<8x128xf32>
    %46 = arith.maximumf %44, %45 : vector<8x128xf32>
    %47 = vector.extract_strided_slice %46 {offsets = [0, 0], sizes = [8, 8], strides = [1, 1]} : vector<8x128xf32> to vector<8x8xf32>
    %c0_23 = arith.constant 0 : index
    %c0_24 = arith.constant 0 : index
    %48 = vector.load %arg4[%c0_23, %c0_24] : memref<8x8xf32, #tpu.memory_space<vmem>>, vector<8x8xf32>
    tpu.vector_store %arg4[%c0_23, %c0_24], %47 {strides = array<i32>} : memref<8x8xf32, #tpu.memory_space<vmem>>, vector<8x8xf32>,
    return
  }
  func.func @transform_0(%arg0: i32) -> (i32, i32) {
    %c0_i32 = arith.constant 0 : i32
    %c0_i32_0 = arith.constant 0 : i32
    return %arg0, %c0_i32 : i32, i32
  }
  func.func @transform_1(%arg0: i32) -> (i32, i32, i32) {
    %c0_i32 = arith.constant 0 : i32
    %c0_i32_0 = arith.constant 0 : i32
    %c0_i32_1 = arith.constant 0 : i32
    %c0_i32_2 = arith.constant 0 : i32
    return %c0_i32, %c0_i32_0, %c0_i32_1 : i32, i32, i32
  }
  func.func @transform_2(%arg0: i32) -> (i32, i32) {
    %c0_i32 = arith.constant 0 : i32
    %c0_i32_0 = arith.constant 0 : i32
    %c0_i32_1 = arith.constant 0 : i32
    return %c0_i32, %c0_i32_0 : i32, i32
  }
  func.func @transform_3(%arg0: i32) -> (i32, i32) {
    %c0_i32 = arith.constant 0 : i32
    %c0_i32_0 = arith.constant 0 : i32
    return %arg0, %c0_i32 : i32, i32
  }
}

module attributes {stable_mosaic.version = 11 : i64} {
  func.func @_q_mlp_kernel(%arg0: i32, %arg1: memref<8x4xf32, #tpu.memory_space<vmem>>, %arg2: memref<5x128x128xbf16, #tpu.memory_space<vmem>>, %arg3: memref<8x128xf32, #tpu.memory_space<vmem>>, %arg4: memref<8x8xf32, #tpu.memory_space<vmem>>) attributes {dimension_semantics = [#tpu.dimension_semantics<parallel>], iteration_bounds = array<i64: 1>, scalar_prefetch = 0 : i64, scratch_operands = 0 : i64, tpu.core_type = #tpu.core_type<tc>, window_params = [{transform_indices = @transform_0, window_bounds = array<i64: 8, 4>}, {pipeline_mode = #tpu.pipeline_mode<synchronous>, transform_indices = @transform_1, window_bounds = array<i64: 5, 128, 128>}, {pipeline_mode = #tpu.pipeline_mode<synchronous>, transform_indices = @transform_2, window_bounds = array<i64: 8, 128>}, {transform_indices = @transform_3, window_bounds = array<i64: 8, 8>}]} {
    %c0 = arith.constant 0 : index
    %c0_0 = arith.constant 0 : index
    %0 = vector.load %arg3[%c0, %c0_0] : memref<8x128xf32, #tpu.memory_space<vmem>>, vector<8x128xf32>
    %c0_1 = arith.constant 0 : index
    %c0_2 = arith.constant 0 : index
    %1 = vector.load %arg1[%c0_1, %c0_2] : memref<8x4xf32, #tpu.memory_space<vmem>>, vector<8x4xf32>
    %2 = arith.truncf %1 : vector<8x4xf32> to vector<8x4xbf16>
    %c0_3 = arith.constant 0 : index
    %c0_4 = arith.constant 0 : index
    %c0_5 = arith.constant 0 : index
    %3 = vector.load %arg2[%c0_3, %c0_4, %c0_5] : memref<5x128x128xbf16, #tpu.memory_space<vmem>>, vector<1x4x128xbf16>
    %4 = vector.shape_cast %3 : vector<1x4x128xbf16> to vector<4x128xbf16>
    %cst = arith.constant dense<0.000000e+00> : vector<8x128xf32>
    %5 = tpu.matmul %2, %4, %cst {dimension_numbers = #tpu.dot_dimension_numbers<[1], [0], [0], [1], [0, 0, 1, 1], [], []>} : vector<8x4xbf16>, vector<4x128xbf16>, vector<8x128xf32> -> vector<8x128xf32>
    %6 = vector.extract_strided_slice %0 {offsets = [0, 0], sizes = [1, 128], strides = [1, 1]} : vector<8x128xf32> to vector<1x128xf32>
    %7 = vector.broadcast %6 : vector<1x128xf32> to vector<8x128xf32>
    %8 = arith.addf %5, %7 : vector<8x128xf32>
    %cst_6 = arith.constant 0.000000e+00 : f32
    %9 = vector.broadcast %cst_6 : f32 to vector<8x128xf32>
    %10 = arith.maximumf %8, %9 : vector<8x128xf32>
    %11 = arith.truncf %10 : vector<8x128xf32> to vector<8x128xbf16>
    %c1 = arith.constant 1 : index
    %c0_7 = arith.constant 0 : index
    %c0_8 = arith.constant 0 : index
    %12 = vector.load %arg2[%c1, %c0_7, %c0_8] : memref<5x128x128xbf16, #tpu.memory_space<vmem>>, vector<1x128x128xbf16>
    %13 = vector.shape_cast %12 : vector<1x128x128xbf16> to vector<128x128xbf16>
    %cst_9 = arith.constant dense<0.000000e+00> : vector<8x128xf32>
    %14 = tpu.matmul %11, %13, %cst_9 {dimension_numbers = #tpu.dot_dimension_numbers<[1], [0], [0], [1], [0, 0, 1, 1], [], []>} : vector<8x128xbf16>, vector<128x128xbf16>, vector<8x128xf32> -> vector<8x128xf32>
    %15 = vector.extract_strided_slice %0 {offsets = [1, 0], sizes = [1, 128], strides = [1, 1]} : vector<8x128xf32> to vector<1x128xf32>
    %16 = vector.broadcast %15 : vector<1x128xf32> to vector<8x128xf32>
    %17 = arith.addf %14, %16 : vector<8x128xf32>
    %cst_10 = arith.constant 0.000000e+00 : f32
    %18 = vector.broadcast %cst_10 : f32 to vector<8x128xf32>
    %19 = arith.maximumf %17, %18 : vector<8x128xf32>
    %20 = arith.truncf %19 : vector<8x128xf32> to vector<8x128xbf16>
    %c2 = arith.constant 2 : index
    %c0_11 = arith.constant 0 : index
    %c0_12 = arith.constant 0 : index
    %21 = vector.load %arg2[%c2, %c0_11, %c0_12] : memref<5x128x128xbf16, #tpu.memory_space<vmem>>, vector<1x128x128xbf16>
    %22 = vector.shape_cast %21 : vector<1x128x128xbf16> to vector<128x128xbf16>
    %cst_13 = arith.constant dense<0.000000e+00> : vector<8x128xf32>
    %23 = tpu.matmul %20, %22, %cst_13 {dimension_numbers = #tpu.dot_dimension_numbers<[1], [0], [0], [1], [0, 0, 1, 1], [], []>} : vector<8x128xbf16>, vector<128x128xbf16>, vector<8x128xf32> -> vector<8x128xf32>
    %24 = vector.extract_strided_slice %0 {offsets = [2, 0], sizes = [1, 128], strides = [1, 1]} : vector<8x128xf32> to vector<1x128xf32>
    %25 = vector.broadcast %24 : vector<1x128xf32> to vector<8x128xf32>
    %26 = arith.addf %23, %25 : vector<8x128xf32>
    %cst_14 = arith.constant 0.000000e+00 : f32
    %27 = vector.broadcast %cst_14 : f32 to vector<8x128xf32>
    %28 = arith.maximumf %26, %27 : vector<8x128xf32>
    %29 = arith.truncf %28 : vector<8x128xf32> to vector<8x128xbf16>
    %c3 = arith.constant 3 : index
    %c0_15 = arith.constant 0 : index
    %c0_16 = arith.constant 0 : index
    %30 = vector.load %arg2[%c3, %c0_15, %c0_16] : memref<5x128x128xbf16, #tpu.memory_space<vmem>>, vector<1x128x128xbf16>
    %31 = vector.shape_cast %30 : vector<1x128x128xbf16> to vector<128x128xbf16>
    %cst_17 = arith.constant dense<0.000000e+00> : vector<8x128xf32>
    %32 = tpu.matmul %29, %31, %cst_17 {dimension_numbers = #tpu.dot_dimension_numbers<[1], [0], [0], [1], [0, 0, 1, 1], [], []>} : vector<8x128xbf16>, vector<128x128xbf16>, vector<8x128xf32> -> vector<8x128xf32>
    %33 = vector.extract_strided_slice %0 {offsets = [3, 0], sizes = [1, 128], strides = [1, 1]} : vector<8x128xf32> to vector<1x128xf32>
    %34 = vector.broadcast %33 : vector<1x128xf32> to vector<8x128xf32>
    %35 = arith.addf %32, %34 : vector<8x128xf32>
    %cst_18 = arith.constant 0.000000e+00 : f32
    %36 = vector.broadcast %cst_18 : f32 to vector<8x128xf32>
    %37 = arith.maximumf %35, %36 : vector<8x128xf32>
    %38 = arith.truncf %37 : vector<8x128xf32> to vector<8x128xbf16>
    %c4 = arith.constant 4 : index
    %c0_19 = arith.constant 0 : index
    %c0_20 = arith.constant 0 : index
    %39 = vector.load %arg2[%c4, %c0_19, %c0_20] : memref<5x128x128xbf16, #tpu.memory_space<vmem>>, vector<1x128x128xbf16>
    %40 = vector.shape_cast %39 : vector<1x128x128xbf16> to vector<128x128xbf16>
    %cst_21 = arith.constant dense<0.000000e+00> : vector<8x128xf32>
    %41 = tpu.matmul %38, %40, %cst_21 {dimension_numbers = #tpu.dot_dimension_numbers<[1], [0], [0], [1], [0, 0, 1, 1], [], []>} : vector<8x128xbf16>, vector<128x128xbf16>, vector<8x128xf32> -> vector<8x128xf32>
    %42 = vector.extract_strided_slice %0 {offsets = [4, 0], sizes = [1, 128], strides = [1, 1]} : vector<8x128xf32> to vector<1x128xf32>
    %43 = vector.broadcast %42 : vector<1x128xf32> to vector<8x128xf32>
    %44 = arith.addf %41, %43 : vector<8x128xf32>
    %cst_22 = arith.constant 0.000000e+00 : f32
    %45 = vector.broadcast %cst_22 : f32 to vector<8x128xf32>
    %46 = arith.maximumf %44, %45 : vector<8x128xf32>
    %47 = vector.extract_strided_slice %46 {offsets = [0, 0], sizes = [8, 8], strides = [1, 1]} : vector<8x128xf32> to vector<8x8xf32>
    %c0_23 = arith.constant 0 : index
    %c0_24 = arith.constant 0 : index
    %48 = vector.load %arg4[%c0_23, %c0_24] : memref<8x8xf32, #tpu.memory_space<vmem>>, vector<8x8xf32>
    tpu.vector_store %arg4[%c0_23, %c0_24], %47 {strides = array<i32>} : memref<8x8xf32, #tpu.memory_space<vmem>>, vector<8x8xf32>,
    return
  }
  func.func @transform_0(%arg0: i32) -> (i32, i32) {
    %c0_i32 = arith.constant 0 : i32
    %c0_i32_0 = arith.constant 0 : i32
    return %arg0, %c0_i32 : i32, i32
  }
  func.func @transform_1(%arg0: i32) -> (i32, i32, i32) {
    %c0_i32 = arith.constant 0 : i32
    %c0_i32_0 = arith.constant 0 : i32
    %c0_i32_1 = arith.constant 0 : i32
    %c0_i32_2 = arith.constant 0 : i32
    return %c0_i32, %c0_i32_0, %c0_i32_1 : i32, i32, i32
  }
  func.func @transform_2(%arg0: i32) -> (i32, i32) {
    %c0_i32 = arith.constant 0 : i32
    %c0_i32_0 = arith.constant 0 : i32
    %c0_i32_1 = arith.constant 0 : i32
    return %c0_i32, %c0_i32_0 : i32, i32
  }
  func.func @transform_3(%arg0: i32) -> (i32, i32) {
    %c0_i32 = arith.constant 0 : i32
    %c0_i32_0 = arith.constant 0 : i32
    return %arg0, %c0_i32 : i32, i32
  }
}

</mosaic_0001>

<llo_original>
// kernel: tpu_custom_call.1
$region0: #{tpu_custom_call.1}
  #allocation0 [shape = 'u32[]', space=smem, size = 0x4, offset = 0x4, fixed_abs, tag = 'smem constant byte address 0x4 - core index']
  #allocation1 [shape = 'u32[144,128]{1,0:T(1,128)}', space=vmem, size = 0x12000, scoped, tag = 'internal scratch']
  %s0 = inlined_call_operand.vmem [shape: f32[8,4], index: 0, kind: input, shape index: {}]
  %s1 = inlined_call_operand.hbm [shape: bf16[5,128,128], index: 1, kind: input, shape index: {}]
  %s2 = inlined_call_operand.vmem [shape: f32[8,128], index: 2, kind: input, shape index: {}]
  %s3 = inlined_call_operand.hbm [shape: f32[8,8], index: 3, kind: output, shape index: {}]
  %s4 = sld [smem:[#allocation0]]
  $region26: #{tpu_custom_call.1} parent=0
    _
  %s6 = ssub.s32 1, %s4
  %s7 = scalar_select 0, %s6, %s4
  $region1: #{tpu_custom_call.1} parent=0
    #allocation2 [shape = 'u8[163840]{0}', space=vmem, size = 0x28000, scoped, tag = 'input window, operand 1, single buffered']
    #allocation3 [shape = 's32[1]{0}', space=sflag, size = 0x4, scoped, tag = 'scoped memory for tpu_custom_call.1']
    #allocation4 [shape = 's32[1]{0}', space=sflag, size = 0x4, scoped, tag = 'scoped memory for tpu_custom_call.1']
    #allocation5 [shape = 'u8[4096]{0}', space=vmem, size = 0x1000, scoped, tag = 'output window, operand 0, single buffered']
    %8 = vsyncpa [#allocation3], 0
    %9 = vsyncpa [#allocation4], 0
    // Predicated region
    $region2: #{tpu_custom_call.1} parent=1 // pred_check
      _
    $region3: #{tpu_custom_call.1} parent=1 // pred_check_branch
      %11 = sbr.rel (0) target = $region5
    $region4: #{tpu_custom_call.1} parent=1 // pred_region
      _
    $region5: #{tpu_custom_call.1} parent=1 // pred_fallthru
      _
    // Predicated region
    $region6: #{tpu_custom_call.1} parent=1 // pred_check
      _
    $region7: #{tpu_custom_call.1} parent=1 // pred_check_branch
      %13 = sbr.rel (0) target = $region9
    $region8: #{tpu_custom_call.1} parent=1 // pred_region
      %s15 = ssub.s32 5120, 5120
      %16 = vsyncadd [#allocation3], %s15
      %s17 = sshll.u32 [#allocation2], 4
      %s18 = int_to_ptr.vmem [resolvable:$true] %s17
      %23 = dma.hbm_to_vmem [thread:$0]  %s1, 5120, %s18, [#allocation3], 64, 64, 4
    $region9: #{tpu_custom_call.1} parent=1 // pred_fallthru
      _
    // Predicated region
    $region10: #{tpu_custom_call.1} parent=1 // pred_check
      _
    $region11: #{tpu_custom_call.1} parent=1 // pred_check_branch
      %25 = sbr.rel (0) target = $region13
    $region12: #{tpu_custom_call.1} parent=1 // pred_region
      _
    $region13: #{tpu_custom_call.1} parent=1 // pred_fallthru
      _
    // Predicated region
    $region14: #{tpu_custom_call.1} parent=1 // pred_check
      _
    $region15: #{tpu_custom_call.1} parent=1 // pred_check_branch
      %27 = sbr.rel (0) target = $region17
    $region16: #{tpu_custom_call.1} parent=1 // pred_region
      %28 = dma.done [#allocation3], 5120
    $region17: #{tpu_custom_call.1} parent=1 // pred_fallthru
      _
    %v30 = vld [vmem:[%s2] sm:$0xff]
    %v31 = vld [vmem:[%s0] sm:$0xff]
    %v32 = vpack.c.bf16 %v31, %v31
    %v33 = vld [vmem:[#allocation2] sm:$0x3]
    %v34 = vlaneseq
    %v35 = vshrl.u32 %v34, 7
    %v36 = vsub.s32 0, %v35
    %v37 = vrot.slane %v30, %v36
    %vm38 = vcmask 31744
    %v40 = vsel %vm38, %v32, 0
    %vm42 = vcmask 1041408
    %v44 = vsel %vm42, %v33, 0
    %46 = vmatprep.subr.bf16.mxu0 0
    %47 = vmatpush1.bf16.msra.mxu0 %v44
    %48 = vmatprep.subr.bf16.mxu0 0
    %49 = vmatpush1.bf16.msra.mxu0 0
    %50 = vmatprep.subr.bf16.mxu0 0
    %51 = vmatpush1.bf16.msra.mxu0 0
    %52 = vmatprep.subr.bf16.mxu0 0
    %53 = vmatpush1.bf16.msra.mxu0 0
    %54 = vmatprep.subr.bf16.mxu0 0
    %55 = vmatpush1.bf16.msra.mxu0 0
    %56 = vmatprep.subr.bf16.mxu0 0
    %57 = vmatpush1.bf16.msra.mxu0 0
    %58 = vmatprep.subr.bf16.mxu0 0
    %59 = vmatpush1.bf16.msra.mxu0 0
    %60 = vmatprep.subr.bf16.mxu0 0
    %61 = vmatpush1.bf16.msra.mxu0 0
    %62 = vmatprep.subr.bf16.mxu0 0
    %63 = vmatpush1.bf16.msra.mxu0 0
    %64 = vmatprep.subr.bf16.mxu0 0
    %65 = vmatpush1.bf16.msra.mxu0 0
    %66 = vmatprep.subr.bf16.mxu0 0
    %67 = vmatpush1.bf16.msra.mxu0 0
    %68 = vmatprep.subr.bf16.mxu0 0
    %69 = vmatpush1.bf16.msra.mxu0 0
    %70 = vmatprep.subr.bf16.mxu0 0
    %71 = vmatpush1.bf16.msra.mxu0 0
    %72 = vmatprep.subr.bf16.mxu0 0
    %73 = vmatpush1.bf16.msra.mxu0 0
    %74 = vmatprep.subr.bf16.mxu0 0
    %75 = vmatpush1.bf16.msra.mxu0 0
    %76 = vmatprep.subr.bf16.mxu0 0
    %77 = vmatpush1.bf16.msra.mxu0 0
    %78 = vmatprep.mubr.bf16.mxu0 0
    %79 = vmatmul.mubr.bf16.gmra.mrb[0].mxu0 %v40
    %v80 = vpop.f32.mrb[0].mxu0
    %v81 = vadd.f32 %v37, %v80
    %v82 = vpop.f32.mrb[0].mxu0
    %v83 = vpop.f32.mrb[0].mxu0
    %v84 = vpop.f32.mrb[0].mxu0
    %85 = vdwg.mxu0
    %v86 = vmax.f32 %v81, 0.0
    %v87 = vpack.c.bf16 %v86, %v86
    %s88 = scalar_lea.vmem [#allocation2], 64
    %v89 = vld [vmem:[%s88] sm:$0xf]
    %v90 = vld [vmem:[%s88 + $0x4] sm:$0xf]
    %v91 = vld [vmem:[%s88 + $0x8] sm:$0xf]
    %v92 = vld [vmem:[%s88 + $0xc] sm:$0xf]
    %v93 = vld [vmem:[%s88 + $0x10] sm:$0xf]
    %v94 = vld [vmem:[%s88 + $0x14] sm:$0xf]
    %v95 = vld [vmem:[%s88 + $0x18] sm:$0xf]
    %v96 = vld [vmem:[%s88 + $0x1c] sm:$0xf]
    %v97 = vld [vmem:[%s88 + $0x20] sm:$0xf]
    %v98 = vld [vmem:[%s88 + $0x24] sm:$0xf]
    %v99 = vld [vmem:[%s88 + $0x28] sm:$0xf]
    %v100 = vld [vmem:[%s88 + $0x2c] sm:$0xf]
    %v101 = vld [vmem:[%s88 + $0x30] sm:$0xf]
    %v102 = vld [vmem:[%s88 + $0x34] sm:$0xf]
    %v103 = vld [vmem:[%s88 + $0x38] sm:$0xf]
    %v104 = vld [vmem:[%s88 + $0x3c] sm:$0xf]
    %v105 = vlaneseq
    %v106 = vshrl.u32 %v105, 7
    %v107 = vsub.s32 1, %v106
    %v108 = vrot.slane %v30, %v107
    %v125 = vunpack.c.l.b16 %v89
    %v126 = vunpack.c.l.b16 %v90
    %v127 = vunpack.c.l.b16 %v91
    %v128 = vunpack.c.l.b16 %v92
    %v129 = vunpack.c.l.b16 %v93
    %v130 = vunpack.c.l.b16 %v94
    %v131 = vunpack.c.l.b16 %v95
    %v132 = vunpack.c.l.b16 %v96
    %v133 = vunpack.c.l.b16 %v97
    %v134 = vunpack.c.l.b16 %v98
    %v135 = vunpack.c.l.b16 %v99
    %v136 = vunpack.c.l.b16 %v100
    %v137 = vunpack.c.l.b16 %v101
    %v138 = vunpack.c.l.b16 %v102
    %v139 = vunpack.c.l.b16 %v103
    %v140 = vunpack.c.l.b16 %v104
    %v141 = vpack.c.b16 %v126, %v125
    %v142 = vpack.c.b16 %v128, %v127
    %v143 = vpack.c.b16 %v130, %v129
    %v144 = vpack.c.b16 %v132, %v131
    %v145 = vpack.c.b16 %v134, %v133
    %v146 = vpack.c.b16 %v136, %v135
    %v147 = vpack.c.b16 %v138, %v137
    %v148 = vpack.c.b16 %v140, %v139
    %157 = vmatprep.subr.bf16.mxu0 0
    %158 = vmatpush1.bf16.msra.mxu0 %v141
    %159 = vmatprep.subr.bf16.mxu0 0
    %160 = vmatpush1.bf16.msra.mxu0 %v142
    %161 = vmatprep.subr.bf16.mxu0 0
    %162 = vmatpush1.bf16.msra.mxu0 %v143
    %163 = vmatprep.subr.bf16.mxu0 0
    %164 = vmatpush1.bf16.msra.mxu0 %v144
    %165 = vmatprep.subr.bf16.mxu0 0
    %166 = vmatpush1.bf16.msra.mxu0 %v145
    %167 = vmatprep.subr.bf16.mxu0 0
    %168 = vmatpush1.bf16.msra.mxu0 %v146
    %169 = vmatprep.subr.bf16.mxu0 0
    %170 = vmatpush1.bf16.msra.mxu0 %v147
    %171 = vmatprep.subr.bf16.mxu0 0
    %172 = vmatpush1.bf16.msra.mxu0 %v148
    %173 = vmatprep.subr.bf16.mxu0 0
    %174 = vmatpush1.bf16.msra.mxu0 0
    %175 = vmatprep.subr.bf16.mxu0 0
    %176 = vmatpush1.bf16.msra.mxu0 0
    %177 = vmatprep.subr.bf16.mxu0 0
    %178 = vmatpush1.bf16.msra.mxu0 0
    %179 = vmatprep.subr.bf16.mxu0 0
    %180 = vmatpush1.bf16.msra.mxu0 0
    %181 = vmatprep.subr.bf16.mxu0 0
    %182 = vmatpush1.bf16.msra.mxu0 0
    %183 = vmatprep.subr.bf16.mxu0 0
    %184 = vmatpush1.bf16.msra.mxu0 0
    %185 = vmatprep.subr.bf16.mxu0 0
    %186 = vmatpush1.bf16.msra.mxu0 0
    %187 = vmatprep.subr.bf16.mxu0 0
    %188 = vmatpush1.bf16.msra.mxu0 0
    %189 = vmatprep.mubr.bf16.mxu0 0
    %190 = vmatmul.mubr.bf16.gmra.mrb[0].mxu0 %v87
    %v191 = vpop.f32.mrb[0].mxu0
    %v192 = vadd.f32 %v108, %v191
    %v193 = vpop.f32.mrb[0].mxu0
    %v194 = vpop.f32.mrb[0].mxu0
    %v195 = vpop.f32.mrb[0].mxu0
    %196 = vdwg.mxu0
    %v197 = vmax.f32 %v192, 0.0
    %v198 = vpack.c.bf16 %v197, %v197
    %s199 = scalar_lea.vmem [#allocation2], 128
    %v200 = vld [vmem:[%s199] sm:$0xf]
    %v201 = vld [vmem:[%s199 + $0x4] sm:$0xf]
    %v202 = vld [vmem:[%s199 + $0x8] sm:$0xf]
    %v203 = vld [vmem:[%s199 + $0xc] sm:$0xf]
    %v204 = vld [vmem:[%s199 + $0x10] sm:$0xf]
    %v205 = vld [vmem:[%s199 + $0x14] sm:$0xf]
    %v206 = vld [vmem:[%s199 + $0x18] sm:$0xf]
    %v207 = vld [vmem:[%s199 + $0x1c] sm:$0xf]
    %v208 = vld [vmem:[%s199 + $0x20] sm:$0xf]
    %v209 = vld [vmem:[%s199 + $0x24] sm:$0xf]
    %v210 = vld [vmem:[%s199 + $0x28] sm:$0xf]
    %v211 = vld [vmem:[%s199 + $0x2c] sm:$0xf]
    %v212 = vld [vmem:[%s199 + $0x30] sm:$0xf]
    %v213 = vld [vmem:[%s199 + $0x34] sm:$0xf]
    %v214 = vld [vmem:[%s199 + $0x38] sm:$0xf]
    %v215 = vld [vmem:[%s199 + $0x3c] sm:$0xf]
    %v216 = vlaneseq
    %v217 = vshrl.u32 %v216, 7
    %v218 = vsub.s32 2, %v217
    %v219 = vrot.slane %v30, %v218
    %v236 = vunpack.c.l.b16 %v200
    %v237 = vunpack.c.l.b16 %v201
    %v238 = vunpack.c.l.b16 %v202
    %v239 = vunpack.c.l.b16 %v203
    %v240 = vunpack.c.l.b16 %v204
    %v241 = vunpack.c.l.b16 %v205
    %v242 = vunpack.c.l.b16 %v206
    %v243 = vunpack.c.l.b16 %v207
    %v244 = vunpack.c.l.b16 %v208
    %v245 = vunpack.c.l.b16 %v209
    %v246 = vunpack.c.l.b16 %v210
    %v247 = vunpack.c.l.b16 %v211
    %v248 = vunpack.c.l.b16 %v212
    %v249 = vunpack.c.l.b16 %v213
    %v250 = vunpack.c.l.b16 %v214
    %v251 = vunpack.c.l.b16 %v215
    %v252 = vpack.c.b16 %v237, %v236
    %v253 = vpack.c.b16 %v239, %v238
    %v254 = vpack.c.b16 %v241, %v240
    %v255 = vpack.c.b16 %v243, %v242
    %v256 = vpack.c.b16 %v245, %v244
    %v257 = vpack.c.b16 %v247, %v246
    %v258 = vpack.c.b16 %v249, %v248
    %v259 = vpack.c.b16 %v251, %v250
    %268 = vmatprep.subr.bf16.mxu0 0
    %269 = vmatpush1.bf16.msra.mxu0 %v252
    %270 = vmatprep.subr.bf16.mxu0 0
    %271 = vmatpush1.bf16.msra.mxu0 %v253
    %272 = vmatprep.subr.bf16.mxu0 0
    %273 = vmatpush1.bf16.msra.mxu0 %v254
    %274 = vmatprep.subr.bf16.mxu0 0
    %275 = vmatpush1.bf16.msra.mxu0 %v255
    %276 = vmatprep.subr.bf16.mxu0 0
    %277 = vmatpush1.bf16.msra.mxu0 %v256
    %278 = vmatprep.subr.bf16.mxu0 0
    %279 = vmatpush1.bf16.msra.mxu0 %v257
    %280 = vmatprep.subr.bf16.mxu0 0
    %281 = vmatpush1.bf16.msra.mxu0 %v258
    %282 = vmatprep.subr.bf16.mxu0 0
    %283 = vmatpush1.bf16.msra.mxu0 %v259
    %284 = vmatprep.subr.bf16.mxu0 0
    %285 = vmatpush1.bf16.msra.mxu0 0
    %286 = vmatprep.subr.bf16.mxu0 0
    %287 = vmatpush1.bf16.msra.mxu0 0
    %288 = vmatprep.subr.bf16.mxu0 0
    %289 = vmatpush1.bf16.msra.mxu0 0
    %290 = vmatprep.subr.bf16.mxu0 0
    %291 = vmatpush1.bf16.msra.mxu0 0
    %292 = vmatprep.subr.bf16.mxu0 0
    %293 = vmatpush1.bf16.msra.mxu0 0
    %294 = vmatprep.subr.bf16.mxu0 0
    %295 = vmatpush1.bf16.msra.mxu0 0
    %296 = vmatprep.subr.bf16.mxu0 0
    %297 = vmatpush1.bf16.msra.mxu0 0
    %298 = vmatprep.subr.bf16.mxu0 0
    %299 = vmatpush1.bf16.msra.mxu0 0
    %300 = vmatprep.mubr.bf16.mxu0 0
    %301 = vmatmul.mubr.bf16.gmra.mrb[0].mxu0 %v198
    %v302 = vpop.f32.mrb[0].mxu0
    %v303 = vadd.f32 %v219, %v302
    %v304 = vpop.f32.mrb[0].mxu0
    %v305 = vpop.f32.mrb[0].mxu0
    %v306 = vpop.f32.mrb[0].mxu0
    %307 = vdwg.mxu0
    %v308 = vmax.f32 %v303, 0.0
    %v309 = vpack.c.bf16 %v308, %v308
    %s310 = scalar_lea.vmem [#allocation2], 192
    %v311 = vld [vmem:[%s310] sm:$0xf]
    %v312 = vld [vmem:[%s310 + $0x4] sm:$0xf]
    %v313 = vld [vmem:[%s310 + $0x8] sm:$0xf]
    %v314 = vld [vmem:[%s310 + $0xc] sm:$0xf]
    %v315 = vld [vmem:[%s310 + $0x10] sm:$0xf]
    %v316 = vld [vmem:[%s310 + $0x14] sm:$0xf]
    %v317 = vld [vmem:[%s310 + $0x18] sm:$0xf]
    %v318 = vld [vmem:[%s310 + $0x1c] sm:$0xf]
    %v319 = vld [vmem:[%s310 + $0x20] sm:$0xf]
    %v320 = vld [vmem:[%s310 + $0x24] sm:$0xf]
    %v321 = vld [vmem:[%s310 + $0x28] sm:$0xf]
    %v322 = vld [vmem:[%s310 + $0x2c] sm:$0xf]
    %v323 = vld [vmem:[%s310 + $0x30] sm:$0xf]
    %v324 = vld [vmem:[%s310 + $0x34] sm:$0xf]
    %v325 = vld [vmem:[%s310 + $0x38] sm:$0xf]
    %v326 = vld [vmem:[%s310 + $0x3c] sm:$0xf]
    %v327 = vlaneseq
    %v328 = vshrl.u32 %v327, 7
    %v329 = vsub.s32 3, %v328
    %v330 = vrot.slane %v30, %v329
    %v347 = vunpack.c.l.b16 %v311
    %v348 = vunpack.c.l.b16 %v312
    %v349 = vunpack.c.l.b16 %v313
    %v350 = vunpack.c.l.b16 %v314
    %v351 = vunpack.c.l.b16 %v315
    %v352 = vunpack.c.l.b16 %v316
    %v353 = vunpack.c.l.b16 %v317
    %v354 = vunpack.c.l.b16 %v318
    %v355 = vunpack.c.l.b16 %v319
    %v356 = vunpack.c.l.b16 %v320
    %v357 = vunpack.c.l.b16 %v321
    %v358 = vunpack.c.l.b16 %v322
    %v359 = vunpack.c.l.b16 %v323
    %v360 = vunpack.c.l.b16 %v324
    %v361 = vunpack.c.l.b16 %v325
    %v362 = vunpack.c.l.b16 %v326
    %v363 = vpack.c.b16 %v348, %v347
    %v364 = vpack.c.b16 %v350, %v349
    %v365 = vpack.c.b16 %v352, %v351
    %v366 = vpack.c.b16 %v354, %v353
    %v367 = vpack.c.b16 %v356, %v355
    %v368 = vpack.c.b16 %v358, %v357
    %v369 = vpack.c.b16 %v360, %v359
    %v370 = vpack.c.b16 %v362, %v361
    %379 = vmatprep.subr.bf16.mxu0 0
    %380 = vmatpush1.bf16.msra.mxu0 %v363
    %381 = vmatprep.subr.bf16.mxu0 0
    %382 = vmatpush1.bf16.msra.mxu0 %v364
    %383 = vmatprep.subr.bf16.mxu0 0
    %384 = vmatpush1.bf16.msra.mxu0 %v365
    %385 = vmatprep.subr.bf16.mxu0 0
    %386 = vmatpush1.bf16.msra.mxu0 %v366
    %387 = vmatprep.subr.bf16.mxu0 0
    %388 = vmatpush1.bf16.msra.mxu0 %v367
    %389 = vmatprep.subr.bf16.mxu0 0
    %390 = vmatpush1.bf16.msra.mxu0 %v368
    %391 = vmatprep.subr.bf16.mxu0 0
    %392 = vmatpush1.bf16.msra.mxu0 %v369
    %393 = vmatprep.subr.bf16.mxu0 0
    %394 = vmatpush1.bf16.msra.mxu0 %v370
    %395 = vmatprep.subr.bf16.mxu0 0
    %396 = vmatpush1.bf16.msra.mxu0 0
    %397 = vmatprep.subr.bf16.mxu0 0
    %398 = vmatpush1.bf16.msra.mxu0 0
    %399 = vmatprep.subr.bf16.mxu0 0
    %400 = vmatpush1.bf16.msra.mxu0 0
    %401 = vmatprep.subr.bf16.mxu0 0
    %402 = vmatpush1.bf16.msra.mxu0 0
    %403 = vmatprep.subr.bf16.mxu0 0
    %404 = vmatpush1.bf16.msra.mxu0 0
    %405 = vmatprep.subr.bf16.mxu0 0
    %406 = vmatpush1.bf16.msra.mxu0 0
    %407 = vmatprep.subr.bf16.mxu0 0
    %408 = vmatpush1.bf16.msra.mxu0 0
    %409 = vmatprep.subr.bf16.mxu0 0
    %410 = vmatpush1.bf16.msra.mxu0 0
    %411 = vmatprep.mubr.bf16.mxu0 0
    %412 = vmatmul.mubr.bf16.gmra.mrb[0].mxu0 %v309
    %v413 = vpop.f32.mrb[0].mxu0
    %v414 = vadd.f32 %v330, %v413
    %v415 = vpop.f32.mrb[0].mxu0
    %v416 = vpop.f32.mrb[0].mxu0
    %v417 = vpop.f32.mrb[0].mxu0
    %418 = vdwg.mxu0
    %v419 = vmax.f32 %v414, 0.0
    %v420 = vpack.c.bf16 %v419, %v419
    %s421 = scalar_lea.vmem [#allocation2], 256
    %v422 = vld [vmem:[%s421] sm:$0xf]
    %v423 = vld [vmem:[%s421 + $0x4] sm:$0xf]
    %v424 = vld [vmem:[%s421 + $0x8] sm:$0xf]
    %v425 = vld [vmem:[%s421 + $0xc] sm:$0xf]
    %v426 = vld [vmem:[%s421 + $0x10] sm:$0xf]
    %v427 = vld [vmem:[%s421 + $0x14] sm:$0xf]
    %v428 = vld [vmem:[%s421 + $0x18] sm:$0xf]
    %v429 = vld [vmem:[%s421 + $0x1c] sm:$0xf]
    %v430 = vld [vmem:[%s421 + $0x20] sm:$0xf]
    %v431 = vld [vmem:[%s421 + $0x24] sm:$0xf]
    %v432 = vld [vmem:[%s421 + $0x28] sm:$0xf]
    %v433 = vld [vmem:[%s421 + $0x2c] sm:$0xf]
    %v434 = vld [vmem:[%s421 + $0x30] sm:$0xf]
    %v435 = vld [vmem:[%s421 + $0x34] sm:$0xf]
    %v436 = vld [vmem:[%s421 + $0x38] sm:$0xf]
    %v437 = vld [vmem:[%s421 + $0x3c] sm:$0xf]
    %v438 = vlaneseq
    %v439 = vshrl.u32 %v438, 7
    %v440 = vsub.s32 4, %v439
    %v441 = vrot.slane %v30, %v440
    %v458 = vunpack.c.l.b16 %v422
    %v459 = vunpack.c.l.b16 %v423
    %v460 = vunpack.c.l.b16 %v424
    %v461 = vunpack.c.l.b16 %v425
    %v462 = vunpack.c.l.b16 %v426
    %v463 = vunpack.c.l.b16 %v427
    %v464 = vunpack.c.l.b16 %v428
    %v465 = vunpack.c.l.b16 %v429
    %v466 = vunpack.c.l.b16 %v430
    %v467 = vunpack.c.l.b16 %v431
    %v468 = vunpack.c.l.b16 %v432
    %v469 = vunpack.c.l.b16 %v433
    %v470 = vunpack.c.l.b16 %v434
    %v471 = vunpack.c.l.b16 %v435
    %v472 = vunpack.c.l.b16 %v436
    %v473 = vunpack.c.l.b16 %v437
    %v474 = vpack.c.b16 %v459, %v458
    %v475 = vpack.c.b16 %v461, %v460
    %v476 = vpack.c.b16 %v463, %v462
    %v477 = vpack.c.b16 %v465, %v464
    %v478 = vpack.c.b16 %v467, %v466
    %v479 = vpack.c.b16 %v469, %v468
    %v480 = vpack.c.b16 %v471, %v470
    %v481 = vpack.c.b16 %v473, %v472
    %490 = vmatprep.subr.bf16.mxu0 0
    %491 = vmatpush1.bf16.msra.mxu0 %v474
    %492 = vmatprep.subr.bf16.mxu0 0
    %493 = vmatpush1.bf16.msra.mxu0 %v475
    %494 = vmatprep.subr.bf16.mxu0 0
    %495 = vmatpush1.bf16.msra.mxu0 %v476
    %496 = vmatprep.subr.bf16.mxu0 0
    %497 = vmatpush1.bf16.msra.mxu0 %v477
    %498 = vmatprep.subr.bf16.mxu0 0
    %499 = vmatpush1.bf16.msra.mxu0 %v478
    %500 = vmatprep.subr.bf16.mxu0 0
    %501 = vmatpush1.bf16.msra.mxu0 %v479
    %502 = vmatprep.subr.bf16.mxu0 0
    %503 = vmatpush1.bf16.msra.mxu0 %v480
    %504 = vmatprep.subr.bf16.mxu0 0
    %505 = vmatpush1.bf16.msra.mxu0 %v481
    %506 = vmatprep.subr.bf16.mxu0 0
    %507 = vmatpush1.bf16.msra.mxu0 0
    %508 = vmatprep.subr.bf16.mxu0 0
    %509 = vmatpush1.bf16.msra.mxu0 0
    %510 = vmatprep.subr.bf16.mxu0 0
    %511 = vmatpush1.bf16.msra.mxu0 0
    %512 = vmatprep.subr.bf16.mxu0 0
    %513 = vmatpush1.bf16.msra.mxu0 0
    %514 = vmatprep.subr.bf16.mxu0 0
    %515 = vmatpush1.bf16.msra.mxu0 0
    %516 = vmatprep.subr.bf16.mxu0 0
    %517 = vmatpush1.bf16.msra.mxu0 0
    %518 = vmatprep.subr.bf16.mxu0 0
    %519 = vmatpush1.bf16.msra.mxu0 0
    %520 = vmatprep.subr.bf16.mxu0 0
    %521 = vmatpush1.bf16.msra.mxu0 0
    %522 = vmatprep.mubr.bf16.mxu0 0
    %523 = vmatmul.mubr.bf16.gmra.mrb[0].mxu0 %v420
    %v524 = vpop.f32.mrb[0].mxu0
    %v525 = vadd.f32 %v441, %v524
    %v526 = vpop.f32.mrb[0].mxu0
    %v527 = vpop.f32.mrb[0].mxu0
    %v528 = vpop.f32.mrb[0].mxu0
    %529 = vdwg.mxu0
    %v530 = vmax.f32 %v525, 0.0
    %vm531 = vcmask 64512
    %532 = vst.msk [vmem:[#allocation5] sm:$0xff] %vm531, %v530
    // Predicated region
    $region18: #{tpu_custom_call.1} parent=1 // pred_check
      _
    $region19: #{tpu_custom_call.1} parent=1 // pred_check_branch
      %534 = sbr.rel (0) target = $region21
    $region20: #{tpu_custom_call.1} parent=1 // pred_region
      %s536 = ssub.s32 128, 128
      %537 = vsyncadd [#allocation4], %s536
      %s539 = sshll.u32 [#allocation5], 4
      %s540 = int_to_ptr.vmem [resolvable:$true] %s539
      %542 = dma.vmem_to_hbm [thread:$0]  %s540, 128, %s3, [#allocation4]
    $region21: #{tpu_custom_call.1} parent=1 // pred_fallthru
      _
    // Predicated region
    $region22: #{tpu_custom_call.1} parent=1 // pred_check
      _
    $region23: #{tpu_custom_call.1} parent=1 // pred_check_branch
      %544 = sbr.rel (0) target = $region25
    $region24: #{tpu_custom_call.1} parent=1 // pred_region
      %545 = dma.done [#allocation4], 128
    $region25: #{tpu_custom_call.1} parent=1 // pred_fallthru
      _
    %546 = vsyncpa [#allocation3], 1
    %547 = vsyncpa [#allocation4], 1

// kernel: tpu_custom_call.1
$region0: #{tpu_custom_call.1}
  #allocation0 [shape = 'u32[]', space=smem, size = 0x4, offset = 0x4, fixed_abs, tag = 'smem constant byte address 0x4 - core index']
  #allocation1 [shape = 'u32[144,128]{1,0:T(1,128)}', space=vmem, size = 0x12000, scoped, tag = 'internal scratch']
  %s0 = inlined_call_operand.vmem [shape: f32[8,4], index: 0, kind: input, shape index: {}]
  %s1 = inlined_call_operand.hbm [shape: bf16[5,128,128], index: 1, kind: input, shape index: {}]
  %s2 = inlined_call_operand.vmem [shape: f32[8,128], index: 2, kind: input, shape index: {}]
  %s3 = inlined_call_operand.hbm [shape: f32[8,8], index: 3, kind: output, shape index: {}]
  %s4 = sld [smem:[#allocation0]]
  $region26: #{tpu_custom_call.1} parent=0
    _
  %s6 = ssub.s32 1, %s4
  %s7 = scalar_select 0, %s6, %s4
  $region1: #{tpu_custom_call.1} parent=0
    #allocation2 [shape = 'u8[163840]{0}', space=vmem, size = 0x28000, scoped, tag = 'input window, operand 1, single buffered']
    #allocation3 [shape = 's32[1]{0}', space=sflag, size = 0x4, scoped, tag = 'scoped memory for tpu_custom_call.1']
    #allocation4 [shape = 's32[1]{0}', space=sflag, size = 0x4, scoped, tag = 'scoped memory for tpu_custom_call.1']
    #allocation5 [shape = 'u8[4096]{0}', space=vmem, size = 0x1000, scoped, tag = 'output window, operand 0, single buffered']
    %8 = vsyncpa [#allocation3], 0
    %9 = vsyncpa [#allocation4], 0
    // Predicated region
    $region2: #{tpu_custom_call.1} parent=1 // pred_check
      _
    $region3: #{tpu_custom_call.1} parent=1 // pred_check_branch
      %11 = sbr.rel (0) target = $region5
    $region4: #{tpu_custom_call.1} parent=1 // pred_region
      _
    $region5: #{tpu_custom_call.1} parent=1 // pred_fallthru
      _
    // Predicated region
    $region6: #{tpu_custom_call.1} parent=1 // pred_check
      _
    $region7: #{tpu_custom_call.1} parent=1 // pred_check_branch
      %13 = sbr.rel (0) target = $region9
    $region8: #{tpu_custom_call.1} parent=1 // pred_region
      %s15 = ssub.s32 5120, 5120
      %16 = vsyncadd [#allocation3], %s15
      %s17 = sshll.u32 [#allocation2], 4
      %s18 = int_to_ptr.vmem [resolvable:$true] %s17
      %23 = dma.hbm_to_vmem [thread:$0]  %s1, 5120, %s18, [#allocation3], 64, 64, 4
    $region9: #{tpu_custom_call.1} parent=1 // pred_fallthru
      _
    // Predicated region
    $region10: #{tpu_custom_call.1} parent=1 // pred_check
      _
    $region11: #{tpu_custom_call.1} parent=1 // pred_check_branch
      %25 = sbr.rel (0) target = $region13
    $region12: #{tpu_custom_call.1} parent=1 // pred_region
      _
    $region13: #{tpu_custom_call.1} parent=1 // pred_fallthru
      _
    // Predicated region
    $region14: #{tpu_custom_call.1} parent=1 // pred_check
      _
    $region15: #{tpu_custom_call.1} parent=1 // pred_check_branch
      %27 = sbr.rel (0) target = $region17
    $region16: #{tpu_custom_call.1} parent=1 // pred_region
      %28 = dma.done [#allocation3], 5120
    $region17: #{tpu_custom_call.1} parent=1 // pred_fallthru
      _
    %v30 = vld [vmem:[%s2] sm:$0xff]
    %v31 = vld [vmem:[%s0] sm:$0xff]
    %v32 = vpack.c.bf16 %v31, %v31
    %v33 = vld [vmem:[#allocation2] sm:$0x3]
    %v34 = vlaneseq
    %v35 = vshrl.u32 %v34, 7
    %v36 = vsub.s32 0, %v35
    %v37 = vrot.slane %v30, %v36
    %vm38 = vcmask 31744
    %v40 = vsel %vm38, %v32, 0
    %vm42 = vcmask 1041408
    %v44 = vsel %vm42, %v33, 0
    %46 = vmatprep.subr.bf16.mxu0 0
    %47 = vmatpush1.bf16.msra.mxu0 %v44
    %48 = vmatprep.subr.bf16.mxu0 0
    %49 = vmatpush1.bf16.msra.mxu0 0
    %50 = vmatprep.subr.bf16.mxu0 0
    %51 = vmatpush1.bf16.msra.mxu0 0
    %52 = vmatprep.subr.bf16.mxu0 0
    %53 = vmatpush1.bf16.msra.mxu0 0
    %54 = vmatprep.subr.bf16.mxu0 0
    %55 = vmatpush1.bf16.msra.mxu0 0
    %56 = vmatprep.subr.bf16.mxu0 0
    %57 = vmatpush1.bf16.msra.mxu0 0
    %58 = vmatprep.subr.bf16.mxu0 0
    %59 = vmatpush1.bf16.msra.mxu0 0
    %60 = vmatprep.subr.bf16.mxu0 0
    %61 = vmatpush1.bf16.msra.mxu0 0
    %62 = vmatprep.subr.bf16.mxu0 0
    %63 = vmatpush1.bf16.msra.mxu0 0
    %64 = vmatprep.subr.bf16.mxu0 0
    %65 = vmatpush1.bf16.msra.mxu0 0
    %66 = vmatprep.subr.bf16.mxu0 0
    %67 = vmatpush1.bf16.msra.mxu0 0
    %68 = vmatprep.subr.bf16.mxu0 0
    %69 = vmatpush1.bf16.msra.mxu0 0
    %70 = vmatprep.subr.bf16.mxu0 0
    %71 = vmatpush1.bf16.msra.mxu0 0
    %72 = vmatprep.subr.bf16.mxu0 0
    %73 = vmatpush1.bf16.msra.mxu0 0
    %74 = vmatprep.subr.bf16.mxu0 0
    %75 = vmatpush1.bf16.msra.mxu0 0
    %76 = vmatprep.subr.bf16.mxu0 0
    %77 = vmatpush1.bf16.msra.mxu0 0
    %78 = vmatprep.mubr.bf16.mxu0 0
    %79 = vmatmul.mubr.bf16.gmra.mrb[0].mxu0 %v40
    %v80 = vpop.f32.mrb[0].mxu0
    %v81 = vadd.f32 %v37, %v80
    %v82 = vpop.f32.mrb[0].mxu0
    %v83 = vpop.f32.mrb[0].mxu0
    %v84 = vpop.f32.mrb[0].mxu0
    %85 = vdwg.mxu0
    %v86 = vmax.f32 %v81, 0.0
    %v87 = vpack.c.bf16 %v86, %v86
    %s88 = scalar_lea.vmem [#allocation2], 64
    %v89 = vld [vmem:[%s88] sm:$0xf]
    %v90 = vld [vmem:[%s88 + $0x4] sm:$0xf]
    %v91 = vld [vmem:[%s88 + $0x8] sm:$0xf]
    %v92 = vld [vmem:[%s88 + $0xc] sm:$0xf]
    %v93 = vld [vmem:[%s88 + $0x10] sm:$0xf]
    %v94 = vld [vmem:[%s88 + $0x14] sm:$0xf]
    %v95 = vld [vmem:[%s88 + $0x18] sm:$0xf]
    %v96 = vld [vmem:[%s88 + $0x1c] sm:$0xf]
    %v97 = vld [vmem:[%s88 + $0x20] sm:$0xf]
    %v98 = vld [vmem:[%s88 + $0x24] sm:$0xf]
    %v99 = vld [vmem:[%s88 + $0x28] sm:$0xf]
    %v100 = vld [vmem:[%s88 + $0x2c] sm:$0xf]
    %v101 = vld [vmem:[%s88 + $0x30] sm:$0xf]
    %v102 = vld [vmem:[%s88 + $0x34] sm:$0xf]
    %v103 = vld [vmem:[%s88 + $0x38] sm:$0xf]
    %v104 = vld [vmem:[%s88 + $0x3c] sm:$0xf]
    %v105 = vlaneseq
    %v106 = vshrl.u32 %v105, 7
    %v107 = vsub.s32 1, %v106
    %v108 = vrot.slane %v30, %v107
    %v125 = vunpack.c.l.b16 %v89
    %v126 = vunpack.c.l.b16 %v90
    %v127 = vunpack.c.l.b16 %v91
    %v128 = vunpack.c.l.b16 %v92
    %v129 = vunpack.c.l.b16 %v93
    %v130 = vunpack.c.l.b16 %v94
    %v131 = vunpack.c.l.b16 %v95
    %v132 = vunpack.c.l.b16 %v96
    %v133 = vunpack.c.l.b16 %v97
    %v134 = vunpack.c.l.b16 %v98
    %v135 = vunpack.c.l.b16 %v99
    %v136 = vunpack.c.l.b16 %v100
    %v137 = vunpack.c.l.b16 %v101
    %v138 = vunpack.c.l.b16 %v102
    %v139 = vunpack.c.l.b16 %v103
    %v140 = vunpack.c.l.b16 %v104
    %v141 = vpack.c.b16 %v126, %v125
    %v142 = vpack.c.b16 %v128, %v127
    %v143 = vpack.c.b16 %v130, %v129
    %v144 = vpack.c.b16 %v132, %v131
    %v145 = vpack.c.b16 %v134, %v133
    %v146 = vpack.c.b16 %v136, %v135
    %v147 = vpack.c.b16 %v138, %v137
    %v148 = vpack.c.b16 %v140, %v139
    %157 = vmatprep.subr.bf16.mxu0 0
    %158 = vmatpush1.bf16.msra.mxu0 %v141
    %159 = vmatprep.subr.bf16.mxu0 0
    %160 = vmatpush1.bf16.msra.mxu0 %v142
    %161 = vmatprep.subr.bf16.mxu0 0
    %162 = vmatpush1.bf16.msra.mxu0 %v143
    %163 = vmatprep.subr.bf16.mxu0 0
    %164 = vmatpush1.bf16.msra.mxu0 %v144
    %165 = vmatprep.subr.bf16.mxu0 0
    %166 = vmatpush1.bf16.msra.mxu0 %v145
    %167 = vmatprep.subr.bf16.mxu0 0
    %168 = vmatpush1.bf16.msra.mxu0 %v146
    %169 = vmatprep.subr.bf16.mxu0 0
    %170 = vmatpush1.bf16.msra.mxu0 %v147
    %171 = vmatprep.subr.bf16.mxu0 0
    %172 = vmatpush1.bf16.msra.mxu0 %v148
    %173 = vmatprep.subr.bf16.mxu0 0
    %174 = vmatpush1.bf16.msra.mxu0 0
    %175 = vmatprep.subr.bf16.mxu0 0
    %176 = vmatpush1.bf16.msra.mxu0 0
    %177 = vmatprep.subr.bf16.mxu0 0
    %178 = vmatpush1.bf16.msra.mxu0 0
    %179 = vmatprep.subr.bf16.mxu0 0
    %180 = vmatpush1.bf16.msra.mxu0 0
    %181 = vmatprep.subr.bf16.mxu0 0
    %182 = vmatpush1.bf16.msra.mxu0 0
    %183 = vmatprep.subr.bf16.mxu0 0
    %184 = vmatpush1.bf16.msra.mxu0 0
    %185 = vmatprep.subr.bf16.mxu0 0
    %186 = vmatpush1.bf16.msra.mxu0 0
    %187 = vmatprep.subr.bf16.mxu0 0
    %188 = vmatpush1.bf16.msra.mxu0 0
    %189 = vmatprep.mubr.bf16.mxu0 0
    %190 = vmatmul.mubr.bf16.gmra.mrb[0].mxu0 %v87
    %v191 = vpop.f32.mrb[0].mxu0
    %v192 = vadd.f32 %v108, %v191
    %v193 = vpop.f32.mrb[0].mxu0
    %v194 = vpop.f32.mrb[0].mxu0
    %v195 = vpop.f32.mrb[0].mxu0
    %196 = vdwg.mxu0
    %v197 = vmax.f32 %v192, 0.0
    %v198 = vpack.c.bf16 %v197, %v197
    %s199 = scalar_lea.vmem [#allocation2], 128
    %v200 = vld [vmem:[%s199] sm:$0xf]
    %v201 = vld [vmem:[%s199 + $0x4] sm:$0xf]
    %v202 = vld [vmem:[%s199 + $0x8] sm:$0xf]
    %v203 = vld [vmem:[%s199 + $0xc] sm:$0xf]
    %v204 = vld [vmem:[%s199 + $0x10] sm:$0xf]
    %v205 = vld [vmem:[%s199 + $0x14] sm:$0xf]
    %v206 = vld [vmem:[%s199 + $0x18] sm:$0xf]
    %v207 = vld [vmem:[%s199 + $0x1c] sm:$0xf]
    %v208 = vld [vmem:[%s199 + $0x20] sm:$0xf]
    %v209 = vld [vmem:[%s199 + $0x24] sm:$0xf]
    %v210 = vld [vmem:[%s199 + $0x28] sm:$0xf]
    %v211 = vld [vmem:[%s199 + $0x2c] sm:$0xf]
    %v212 = vld [vmem:[%s199 + $0x30] sm:$0xf]
    %v213 = vld [vmem:[%s199 + $0x34] sm:$0xf]
    %v214 = vld [vmem:[%s199 + $0x38] sm:$0xf]
    %v215 = vld [vmem:[%s199 + $0x3c] sm:$0xf]
    %v216 = vlaneseq
    %v217 = vshrl.u32 %v216, 7
    %v218 = vsub.s32 2, %v217
    %v219 = vrot.slane %v30, %v218
    %v236 = vunpack.c.l.b16 %v200
    %v237 = vunpack.c.l.b16 %v201
    %v238 = vunpack.c.l.b16 %v202
    %v239 = vunpack.c.l.b16 %v203
    %v240 = vunpack.c.l.b16 %v204
    %v241 = vunpack.c.l.b16 %v205
    %v242 = vunpack.c.l.b16 %v206
    %v243 = vunpack.c.l.b16 %v207
    %v244 = vunpack.c.l.b16 %v208
    %v245 = vunpack.c.l.b16 %v209
    %v246 = vunpack.c.l.b16 %v210
    %v247 = vunpack.c.l.b16 %v211
    %v248 = vunpack.c.l.b16 %v212
    %v249 = vunpack.c.l.b16 %v213
    %v250 = vunpack.c.l.b16 %v214
    %v251 = vunpack.c.l.b16 %v215
    %v252 = vpack.c.b16 %v237, %v236
    %v253 = vpack.c.b16 %v239, %v238
    %v254 = vpack.c.b16 %v241, %v240
    %v255 = vpack.c.b16 %v243, %v242
    %v256 = vpack.c.b16 %v245, %v244
    %v257 = vpack.c.b16 %v247, %v246
    %v258 = vpack.c.b16 %v249, %v248
    %v259 = vpack.c.b16 %v251, %v250
    %268 = vmatprep.subr.bf16.mxu0 0
    %269 = vmatpush1.bf16.msra.mxu0 %v252
    %270 = vmatprep.subr.bf16.mxu0 0
    %271 = vmatpush1.bf16.msra.mxu0 %v253
    %272 = vmatprep.subr.bf16.mxu0 0
    %273 = vmatpush1.bf16.msra.mxu0 %v254
    %274 = vmatprep.subr.bf16.mxu0 0
    %275 = vmatpush1.bf16.msra.mxu0 %v255
    %276 = vmatprep.subr.bf16.mxu0 0
    %277 = vmatpush1.bf16.msra.mxu0 %v256
    %278 = vmatprep.subr.bf16.mxu0 0
    %279 = vmatpush1.bf16.msra.mxu0 %v257
    %280 = vmatprep.subr.bf16.mxu0 0
    %281 = vmatpush1.bf16.msra.mxu0 %v258
    %282 = vmatprep.subr.bf16.mxu0 0
    %283 = vmatpush1.bf16.msra.mxu0 %v259
    %284 = vmatprep.subr.bf16.mxu0 0
    %285 = vmatpush1.bf16.msra.mxu0 0
    %286 = vmatprep.subr.bf16.mxu0 0
    %287 = vmatpush1.bf16.msra.mxu0 0
    %288 = vmatprep.subr.bf16.mxu0 0
    %289 = vmatpush1.bf16.msra.mxu0 0
    %290 = vmatprep.subr.bf16.mxu0 0
    %291 = vmatpush1.bf16.msra.mxu0 0
    %292 = vmatprep.subr.bf16.mxu0 0
    %293 = vmatpush1.bf16.msra.mxu0 0
    %294 = vmatprep.subr.bf16.mxu0 0
    %295 = vmatpush1.bf16.msra.mxu0 0
    %296 = vmatprep.subr.bf16.mxu0 0
    %297 = vmatpush1.bf16.msra.mxu0 0
    %298 = vmatprep.subr.bf16.mxu0 0
    %299 = vmatpush1.bf16.msra.mxu0 0
    %300 = vmatprep.mubr.bf16.mxu0 0
    %301 = vmatmul.mubr.bf16.gmra.mrb[0].mxu0 %v198
    %v302 = vpop.f32.mrb[0].mxu0
    %v303 = vadd.f32 %v219, %v302
    %v304 = vpop.f32.mrb[0].mxu0
    %v305 = vpop.f32.mrb[0].mxu0
    %v306 = vpop.f32.mrb[0].mxu0
    %307 = vdwg.mxu0
    %v308 = vmax.f32 %v303, 0.0
    %v309 = vpack.c.bf16 %v308, %v308
    %s310 = scalar_lea.vmem [#allocation2], 192
    %v311 = vld [vmem:[%s310] sm:$0xf]
    %v312 = vld [vmem:[%s310 + $0x4] sm:$0xf]
    %v313 = vld [vmem:[%s310 + $0x8] sm:$0xf]
    %v314 = vld [vmem:[%s310 + $0xc] sm:$0xf]
    %v315 = vld [vmem:[%s310 + $0x10] sm:$0xf]
    %v316 = vld [vmem:[%s310 + $0x14] sm:$0xf]
    %v317 = vld [vmem:[%s310 + $0x18] sm:$0xf]
    %v318 = vld [vmem:[%s310 + $0x1c] sm:$0xf]
    %v319 = vld [vmem:[%s310 + $0x20] sm:$0xf]
    %v320 = vld [vmem:[%s310 + $0x24] sm:$0xf]
    %v321 = vld [vmem:[%s310 + $0x28] sm:$0xf]
    %v322 = vld [vmem:[%s310 + $0x2c] sm:$0xf]
    %v323 = vld [vmem:[%s310 + $0x30] sm:$0xf]
    %v324 = vld [vmem:[%s310 + $0x34] sm:$0xf]
    %v325 = vld [vmem:[%s310 + $0x38] sm:$0xf]
    %v326 = vld [vmem:[%s310 + $0x3c] sm:$0xf]
    %v327 = vlaneseq
    %v328 = vshrl.u32 %v327, 7
    %v329 = vsub.s32 3, %v328
    %v330 = vrot.slane %v30, %v329
    %v347 = vunpack.c.l.b16 %v311
    %v348 = vunpack.c.l.b16 %v312
    %v349 = vunpack.c.l.b16 %v313
    %v350 = vunpack.c.l.b16 %v314
    %v351 = vunpack.c.l.b16 %v315
    %v352 = vunpack.c.l.b16 %v316
    %v353 = vunpack.c.l.b16 %v317
    %v354 = vunpack.c.l.b16 %v318
    %v355 = vunpack.c.l.b16 %v319
    %v356 = vunpack.c.l.b16 %v320
    %v357 = vunpack.c.l.b16 %v321
    %v358 = vunpack.c.l.b16 %v322
    %v359 = vunpack.c.l.b16 %v323
    %v360 = vunpack.c.l.b16 %v324
    %v361 = vunpack.c.l.b16 %v325
    %v362 = vunpack.c.l.b16 %v326
    %v363 = vpack.c.b16 %v348, %v347
    %v364 = vpack.c.b16 %v350, %v349
    %v365 = vpack.c.b16 %v352, %v351
    %v366 = vpack.c.b16 %v354, %v353
    %v367 = vpack.c.b16 %v356, %v355
    %v368 = vpack.c.b16 %v358, %v357
    %v369 = vpack.c.b16 %v360, %v359
    %v370 = vpack.c.b16 %v362, %v361
    %379 = vmatprep.subr.bf16.mxu0 0
    %380 = vmatpush1.bf16.msra.mxu0 %v363
    %381 = vmatprep.subr.bf16.mxu0 0
    %382 = vmatpush1.bf16.msra.mxu0 %v364
    %383 = vmatprep.subr.bf16.mxu0 0
    %384 = vmatpush1.bf16.msra.mxu0 %v365
    %385 = vmatprep.subr.bf16.mxu0 0
    %386 = vmatpush1.bf16.msra.mxu0 %v366
    %387 = vmatprep.subr.bf16.mxu0 0
    %388 = vmatpush1.bf16.msra.mxu0 %v367
    %389 = vmatprep.subr.bf16.mxu0 0
    %390 = vmatpush1.bf16.msra.mxu0 %v368
    %391 = vmatprep.subr.bf16.mxu0 0
    %392 = vmatpush1.bf16.msra.mxu0 %v369
    %393 = vmatprep.subr.bf16.mxu0 0
    %394 = vmatpush1.bf16.msra.mxu0 %v370
    %395 = vmatprep.subr.bf16.mxu0 0
    %396 = vmatpush1.bf16.msra.mxu0 0
    %397 = vmatprep.subr.bf16.mxu0 0
    %398 = vmatpush1.bf16.msra.mxu0 0
    %399 = vmatprep.subr.bf16.mxu0 0
    %400 = vmatpush1.bf16.msra.mxu0 0
    %401 = vmatprep.subr.bf16.mxu0 0
    %402 = vmatpush1.bf16.msra.mxu0 0
    %403 = vmatprep.subr.bf16.mxu0 0
    %404 = vmatpush1.bf16.msra.mxu0 0
    %405 = vmatprep.subr.bf16.mxu0 0
    %406 = vmatpush1.bf16.msra.mxu0 0
    %407 = vmatprep.subr.bf16.mxu0 0
    %408 = vmatpush1.bf16.msra.mxu0 0
    %409 = vmatprep.subr.bf16.mxu0 0
    %410 = vmatpush1.bf16.msra.mxu0 0
    %411 = vmatprep.mubr.bf16.mxu0 0
    %412 = vmatmul.mubr.bf16.gmra.mrb[0].mxu0 %v309
    %v413 = vpop.f32.mrb[0].mxu0
    %v414 = vadd.f32 %v330, %v413
    %v415 = vpop.f32.mrb[0].mxu0
    %v416 = vpop.f32.mrb[0].mxu0
    %v417 = vpop.f32.mrb[0].mxu0
    %418 = vdwg.mxu0
    %v419 = vmax.f32 %v414, 0.0
    %v420 = vpack.c.bf16 %v419, %v419
    %s421 = scalar_lea.vmem [#allocation2], 256
    %v422 = vld [vmem:[%s421] sm:$0xf]
    %v423 = vld [vmem:[%s421 + $0x4] sm:$0xf]
    %v424 = vld [vmem:[%s421 + $0x8] sm:$0xf]
    %v425 = vld [vmem:[%s421 + $0xc] sm:$0xf]
    %v426 = vld [vmem:[%s421 + $0x10] sm:$0xf]
    %v427 = vld [vmem:[%s421 + $0x14] sm:$0xf]
    %v428 = vld [vmem:[%s421 + $0x18] sm:$0xf]
    %v429 = vld [vmem:[%s421 + $0x1c] sm:$0xf]
    %v430 = vld [vmem:[%s421 + $0x20] sm:$0xf]
    %v431 = vld [vmem:[%s421 + $0x24] sm:$0xf]
    %v432 = vld [vmem:[%s421 + $0x28] sm:$0xf]
    %v433 = vld [vmem:[%s421 + $0x2c] sm:$0xf]
    %v434 = vld [vmem:[%s421 + $0x30] sm:$0xf]
    %v435 = vld [vmem:[%s421 + $0x34] sm:$0xf]
    %v436 = vld [vmem:[%s421 + $0x38] sm:$0xf]
    %v437 = vld [vmem:[%s421 + $0x3c] sm:$0xf]
    %v438 = vlaneseq
    %v439 = vshrl.u32 %v438, 7
    %v440 = vsub.s32 4, %v439
    %v441 = vrot.slane %v30, %v440
    %v458 = vunpack.c.l.b16 %v422
    %v459 = vunpack.c.l.b16 %v423
    %v460 = vunpack.c.l.b16 %v424
    %v461 = vunpack.c.l.b16 %v425
    %v462 = vunpack.c.l.b16 %v426
    %v463 = vunpack.c.l.b16 %v427
    %v464 = vunpack.c.l.b16 %v428
    %v465 = vunpack.c.l.b16 %v429
    %v466 = vunpack.c.l.b16 %v430
    %v467 = vunpack.c.l.b16 %v431
    %v468 = vunpack.c.l.b16 %v432
    %v469 = vunpack.c.l.b16 %v433
    %v470 = vunpack.c.l.b16 %v434
    %v471 = vunpack.c.l.b16 %v435
    %v472 = vunpack.c.l.b16 %v436
    %v473 = vunpack.c.l.b16 %v437
    %v474 = vpack.c.b16 %v459, %v458
    %v475 = vpack.c.b16 %v461, %v460
    %v476 = vpack.c.b16 %v463, %v462
    %v477 = vpack.c.b16 %v465, %v464
    %v478 = vpack.c.b16 %v467, %v466
    %v479 = vpack.c.b16 %v469, %v468
    %v480 = vpack.c.b16 %v471, %v470
    %v481 = vpack.c.b16 %v473, %v472
    %490 = vmatprep.subr.bf16.mxu0 0
    %491 = vmatpush1.bf16.msra.mxu0 %v474
    %492 = vmatprep.subr.bf16.mxu0 0
    %493 = vmatpush1.bf16.msra.mxu0 %v475
    %494 = vmatprep.subr.bf16.mxu0 0
    %495 = vmatpush1.bf16.msra.mxu0 %v476
    %496 = vmatprep.subr.bf16.mxu0 0
    %497 = vmatpush1.bf16.msra.mxu0 %v477
    %498 = vmatprep.subr.bf16.mxu0 0
    %499 = vmatpush1.bf16.msra.mxu0 %v478
    %500 = vmatprep.subr.bf16.mxu0 0
    %501 = vmatpush1.bf16.msra.mxu0 %v479
    %502 = vmatprep.subr.bf16.mxu0 0
    %503 = vmatpush1.bf16.msra.mxu0 %v480
    %504 = vmatprep.subr.bf16.mxu0 0
    %505 = vmatpush1.bf16.msra.mxu0 %v481
    %506 = vmatprep.subr.bf16.mxu0 0
    %507 = vmatpush1.bf16.msra.mxu0 0
    %508 = vmatprep.subr.bf16.mxu0 0
    %509 = vmatpush1.bf16.msra.mxu0 0
    %510 = vmatprep.subr.bf16.mxu0 0
    %511 = vmatpush1.bf16.msra.mxu0 0
    %512 = vmatprep.subr.bf16.mxu0 0
    %513 = vmatpush1.bf16.msra.mxu0 0
    %514 = vmatprep.subr.bf16.mxu0 0
    %515 = vmatpush1.bf16.msra.mxu0 0
    %516 = vmatprep.subr.bf16.mxu0 0
    %517 = vmatpush1.bf16.msra.mxu0 0
    %518 = vmatprep.subr.bf16.mxu0 0
    %519 = vmatpush1.bf16.msra.mxu0 0
    %520 = vmatprep.subr.bf16.mxu0 0
    %521 = vmatpush1.bf16.msra.mxu0 0
    %522 = vmatprep.mubr.bf16.mxu0 0
    %523 = vmatmul.mubr.bf16.gmra.mrb[0].mxu0 %v420
    %v524 = vpop.f32.mrb[0].mxu0
    %v525 = vadd.f32 %v441, %v524
    %v526 = vpop.f32.mrb[0].mxu0
    %v527 = vpop.f32.mrb[0].mxu0
    %v528 = vpop.f32.mrb[0].mxu0
    %529 = vdwg.mxu0
    %v530 = vmax.f32 %v525, 0.0
    %vm531 = vcmask 64512
    %532 = vst.msk [vmem:[#allocation5] sm:$0xff] %vm531, %v530
    // Predicated region
    $region18: #{tpu_custom_call.1} parent=1 // pred_check
      _
    $region19: #{tpu_custom_call.1} parent=1 // pred_check_branch
      %534 = sbr.rel (0) target = $region21
    $region20: #{tpu_custom_call.1} parent=1 // pred_region
      %s536 = ssub.s32 128, 128
      %537 = vsyncadd [#allocation4], %s536
      %s539 = sshll.u32 [#allocation5], 4
      %s540 = int_to_ptr.vmem [resolvable:$true] %s539
      %542 = dma.vmem_to_hbm [thread:$0]  %s540, 128, %s3, [#allocation4]
    $region21: #{tpu_custom_call.1} parent=1 // pred_fallthru
      _
    // Predicated region
    $region22: #{tpu_custom_call.1} parent=1 // pred_check
      _
    $region23: #{tpu_custom_call.1} parent=1 // pred_check_branch
      %544 = sbr.rel (0) target = $region25
    $region24: #{tpu_custom_call.1} parent=1 // pred_region
      %545 = dma.done [#allocation4], 128
    $region25: #{tpu_custom_call.1} parent=1 // pred_fallthru
      _
    %546 = vsyncpa [#allocation3], 1
    %547 = vsyncpa [#allocation4], 1

</llo_original>
